<compile_context>
chip_gen: v6e
topology: v6e:2x2x1
jax: 0.10.0
libtpu: 0.0.40
codegen_flags: <defaults>
</compile_context>

<pallas_src>
import functools

import jax
import jax.numpy as jnp
from jax.experimental import pallas as pl
from jax.experimental.pallas import tpu as pltpu


def _round_up(x, m):
    return ((x + m - 1) // m) * m


def _make_mlp_kernel(mxu_dtype):
    def _mlp_kernel(x_ref, w1_ref, b1_ref, w2_ref, b2_ref, o_ref):
        x = x_ref[...]
        if mxu_dtype is not None:
            # In-kernel cast (hidden under DMA) instead of a wrapper-side
            # XLA cast pass over all of x in HBM.
            x = x.astype(mxu_dtype)
        # lin1: x @ W1 on the MXU, f32 accumulate.
        h = jnp.dot(x, w1_ref[...], preferred_element_type=jnp.float32)
        # bias add + ReLU in f32 on the VPU (v5e has no bf16 VPU path).
        h = jnp.maximum(h + b1_ref[...], 0.0)
        # lin2: relu(h) @ W2 (cast activations to the weight dtype for MXU).
        out = jnp.dot(h.astype(w2_ref.dtype), w2_ref[...],
                      preferred_element_type=jnp.float32)
        o_ref[...] = (out + b2_ref[...]).astype(o_ref.dtype)
    return _mlp_kernel


@functools.partial(jax.jit, static_argnames=("block_b", "mxu_dtype"))
def linear_qnet_forward(x, w1, b1, w2, b2, *, block_b=4096, mxu_dtype=None):
    """Fused Linear -> ReLU -> Linear.

    x : [B, input_size]
    w1: [input_size, hidden_size],  b1: [1, hidden_size]
    w2: [hidden_size, output_size], b2: [1, output_size]
    returns [B, output_size] in x.dtype.

    block_b  : max batch tile (rows per grid step).
    mxu_dtype: optional dtype (e.g. jnp.bfloat16) for the matmul operands on
               v6e/v7x.  x stays in its HBM dtype and is cast inside the
               kernel; accumulation / bias / ReLU stay in f32 regardless.
               NOTE: bf16 relaxes numerical accuracy vs an f32 reference.
    """
    B, in_size = x.shape
    hidden = w1.shape[1]
    out_size = w2.shape[1]
    orig_dtype = x.dtype

    # Sublane multiple for the streamed-x tile depends on x's *storage* dtype
    # (8 for 4-byte, 16 for 2-byte, 32 for 1-byte elements).
    itemsize = jnp.dtype(x.dtype).itemsize
    sublane = {4: 8, 2: 16, 1: 32}.get(itemsize, 8)

    # Weights are tiny (~KBs) and VMEM-resident; casting them in the wrapper
    # is negligible.  Biases stay f32 for the VPU path.
    if mxu_dtype is not None:
        w1 = w1.astype(mxu_dtype)
        w2 = w2.astype(mxu_dtype)
    b1 = b1.astype(jnp.float32)
    b2 = b2.astype(jnp.float32)

    # Batch tile: as large as block_b, but aim for >= ~4 grid steps on large B
    # so the "parallel" batch axis actually feeds both TensorCores on v7x
    # (harmless on single-TC v5e/v6e).  No wrapper-side padding of x: Pallas
    # handles the partial last block.
    tb = min(block_b, max(sublane, _round_up(pl.cdiv(B, 4), sublane)))
    tb = _round_up(tb, sublane)
    grid = (pl.cdiv(B, tb),)

    cost = pl.CostEstimate(
        flops=2 * B * (in_size * hidden + hidden * out_size),
        transcendentals=0,
        bytes_accessed=(x.size * itemsize
                        + (w1.size + w2.size) * jnp.dtype(w1.dtype).itemsize
                        + (b1.size + b2.size) * 4
                        + B * out_size * jnp.dtype(orig_dtype).itemsize),
    )

    out = pl.pallas_call(
        _make_mlp_kernel(mxu_dtype),
        out_shape=jax.ShapeDtypeStruct((B, out_size), orig_dtype),
        grid=grid,
        in_specs=[
            # Streamed batch tile of x (double-buffered across the grid).
            pl.BlockSpec((tb, in_size), lambda i: (i, 0)),
            # Weights / biases: constant index_map -> resident in VMEM.
            pl.BlockSpec((in_size, hidden), lambda i: (0, 0)),
            pl.BlockSpec((1, hidden), lambda i: (0, 0)),
            pl.BlockSpec((hidden, out_size), lambda i: (0, 0)),
            pl.BlockSpec((1, out_size), lambda i: (0, 0)),
        ],
        # Narrow (tb, out_size) output block: last block dim equals the full
        # array dim, so this is legal; no lane-padding, no post-kernel slice.
        out_specs=pl.BlockSpec((tb, out_size), lambda i: (i, 0)),
        compiler_params=pltpu.CompilerParams(
            dimension_semantics=("parallel",),
        ),
        cost_estimate=cost,
    )(x, w1, b1, w2, b2)

    return out


def init_params(key, input_size, hidden_size, output_size, dtype=jnp.float32):
    """Deterministic init mimicking nn.Linear (uniform in +/- 1/sqrt(fan_in))."""
    k1, k2, k3, k4 = jax.random.split(key, 4)
    lim1 = 1.0 / (input_size ** 0.5)
    lim2 = 1.0 / (hidden_size ** 0.5)
    w1 = jax.random.uniform(k1, (input_size, hidden_size), dtype, -lim1, lim1)
    b1 = jax.random.uniform(k2, (1, hidden_size), dtype, -lim1, lim1)
    w2 = jax.random.uniform(k3, (hidden_size, output_size), dtype, -lim2, lim2)
    b2 = jax.random.uniform(k4, (1, output_size), dtype, -lim2, lim2)
    return w1, b1, w2, b2


# TODO(synk): LinearQNet.save() (torch.save of the state dict / model folder
# creation) is host-side file I/O with no Pallas equivalent; omitted.

if __name__ == "__main__":
    # Small shapes consistent with the module (snake-game Q-net sizes).
    INPUT, HIDDEN, OUTPUT = 16, 32, 4

    key = jax.random.PRNGKey(0)
    kx, kp, kx2 = jax.random.split(key, 3)
    w1, b1, w2, b2 = init_params(kp, INPUT, HIDDEN, OUTPUT)

    def ref_forward(x):
        return jnp.maximum(x @ w1 + b1, 0.0) @ w2 + b2

    # Case 1: tiny batch (single grid step).
    x = jax.random.normal(kx, (8, INPUT), jnp.float32)
    out = jax.block_until_ready(linear_qnet_forward(x, w1, b1, w2, b2))
    assert out.shape == (8, OUTPUT)
    assert jnp.allclose(out, ref_forward(x), atol=1e-5, rtol=1e-5)

    # Case 2: batch not a multiple of the tile -> exercises multi-step grid
    # and the (un-padded) partial last block.
    x2 = jax.random.normal(kx2, (300, INPUT), jnp.float32)
    out2 = jax.block_until_ready(
        linear_qnet_forward(x2, w1, b1, w2, b2, block_b=128))
    assert out2.shape == (300, OUTPUT)
    assert jnp.allclose(out2, ref_forward(x2), atol=1e-5, rtol=1e-5)

    print("KERNEL_OK")
</pallas_src>

<mosaic_0001>
module attributes {stable_mosaic.version = 11 : i64} {
  func.func @_mlp_kernel(%arg0: i32, %arg1: memref<8x16xf32, #tpu.memory_space<vmem>>, %arg2: memref<16x32xf32, #tpu.memory_space<vmem>>, %arg3: memref<1x32xf32, #tpu.memory_space<vmem>>, %arg4: memref<32x4xf32, #tpu.memory_space<vmem>>, %arg5: memref<1x4xf32, #tpu.memory_space<vmem>>, %arg6: memref<8x4xf32, #tpu.memory_space<vmem>>) attributes {dimension_semantics = [#tpu.dimension_semantics<parallel>], iteration_bounds = array<i64: 1>, scalar_prefetch = 0 : i64, scratch_operands = 0 : i64, tpu.core_type = #tpu.core_type<tc>, window_params = [{transform_indices = @transform_0, window_bounds = array<i64: 8, 16>}, {pipeline_mode = #tpu.pipeline_mode<synchronous>, transform_indices = @transform_1, window_bounds = array<i64: 16, 32>}, {pipeline_mode = #tpu.pipeline_mode<synchronous>, transform_indices = @transform_2, window_bounds = array<i64: 1, 32>}, {pipeline_mode = #tpu.pipeline_mode<synchronous>, transform_indices = @transform_3, window_bounds = array<i64: 32, 4>}, {pipeline_mode = #tpu.pipeline_mode<synchronous>, transform_indices = @transform_4, window_bounds = array<i64: 1, 4>}, {transform_indices = @transform_5, window_bounds = array<i64: 8, 4>}]} {
    %c0 = arith.constant 0 : index
    %c0_0 = arith.constant 0 : index
    %0 = vector.load %arg1[%c0, %c0_0] : memref<8x16xf32, #tpu.memory_space<vmem>>, vector<8x16xf32>
    %c0_1 = arith.constant 0 : index
    %c0_2 = arith.constant 0 : index
    %1 = vector.load %arg2[%c0_1, %c0_2] : memref<16x32xf32, #tpu.memory_space<vmem>>, vector<16x32xf32>
    %cst = arith.constant dense<0.000000e+00> : vector<8x32xf32>
    %2 = tpu.matmul %0, %1, %cst {dimension_numbers = #tpu.dot_dimension_numbers<[1], [0], [0], [1], [0, 0, 1, 1], [], []>} : vector<8x16xf32>, vector<16x32xf32>, vector<8x32xf32> -> vector<8x32xf32>
    %c0_3 = arith.constant 0 : index
    %c0_4 = arith.constant 0 : index
    %3 = vector.load %arg3[%c0_3, %c0_4] : memref<1x32xf32, #tpu.memory_space<vmem>>, vector<1x32xf32>
    %4 = vector.broadcast %3 : vector<1x32xf32> to vector<8x32xf32>
    %5 = arith.addf %2, %4 : vector<8x32xf32>
    %cst_5 = arith.constant 0.000000e+00 : f32
    %6 = vector.broadcast %cst_5 : f32 to vector<8x32xf32>
    %7 = arith.maximumf %5, %6 : vector<8x32xf32>
    %c0_6 = arith.constant 0 : index
    %c0_7 = arith.constant 0 : index
    %8 = vector.load %arg4[%c0_6, %c0_7] : memref<32x4xf32, #tpu.memory_space<vmem>>, vector<32x4xf32>
    %cst_8 = arith.constant dense<0.000000e+00> : vector<8x4xf32>
    %9 = tpu.matmul %7, %8, %cst_8 {dimension_numbers = #tpu.dot_dimension_numbers<[1], [0], [0], [1], [0, 0, 1, 1], [], []>} : vector<8x32xf32>, vector<32x4xf32>, vector<8x4xf32> -> vector<8x4xf32>
    %c0_9 = arith.constant 0 : index
    %c0_10 = arith.constant 0 : index
    %10 = vector.load %arg5[%c0_9, %c0_10] : memref<1x4xf32, #tpu.memory_space<vmem>>, vector<1x4xf32>
    %11 = vector.broadcast %10 : vector<1x4xf32> to vector<8x4xf32>
    %12 = arith.addf %9, %11 : vector<8x4xf32>
    %c0_11 = arith.constant 0 : index
    %c0_12 = arith.constant 0 : index
    %13 = vector.load %arg6[%c0_11, %c0_12] : memref<8x4xf32, #tpu.memory_space<vmem>>, vector<8x4xf32>
    tpu.vector_store %arg6[%c0_11, %c0_12], %12 {strides = array<i32>} : memref<8x4xf32, #tpu.memory_space<vmem>>, vector<8x4xf32>,
    return
  }
  func.func @transform_0(%arg0: i32) -> (i32, i32) {
    %c0_i32 = arith.constant 0 : i32
    %c0_i32_0 = arith.constant 0 : i32
    return %arg0, %c0_i32 : i32, i32
  }
  func.func @transform_1(%arg0: i32) -> (i32, i32) {
    %c0_i32 = arith.constant 0 : i32
    %c0_i32_0 = arith.constant 0 : i32
    %c0_i32_1 = arith.constant 0 : i32
    return %c0_i32, %c0_i32_0 : i32, i32
  }
  func.func @transform_2(%arg0: i32) -> (i32, i32) {
    %c0_i32 = arith.constant 0 : i32
    %c0_i32_0 = arith.constant 0 : i32
    %c0_i32_1 = arith.constant 0 : i32
    return %c0_i32, %c0_i32_0 : i32, i32
  }
  func.func @transform_3(%arg0: i32) -> (i32, i32) {
    %c0_i32 = arith.constant 0 : i32
    %c0_i32_0 = arith.constant 0 : i32
    %c0_i32_1 = arith.constant 0 : i32
    return %c0_i32, %c0_i32_0 : i32, i32
  }
  func.func @transform_4(%arg0: i32) -> (i32, i32) {
    %c0_i32 = arith.constant 0 : i32
    %c0_i32_0 = arith.constant 0 : i32
    %c0_i32_1 = arith.constant 0 : i32
    return %c0_i32, %c0_i32_0 : i32, i32
  }
  func.func @transform_5(%arg0: i32) -> (i32, i32) {
    %c0_i32 = arith.constant 0 : i32
    %c0_i32_0 = arith.constant 0 : i32
    return %arg0, %c0_i32 : i32, i32
  }
}

</mosaic_0001>

<llo_original>
// kernel: linear_qnet_forward.1
$region0: #{linear_qnet_forward.1}
  #allocation0 [shape = 'u32[]', space=smem, size = 0x4, offset = 0x4, fixed_abs, tag = 'smem constant byte address 0x4 - core index']
  #allocation1 [shape = 'u32[144,128]{1,0:T(1,128)}', space=vmem, size = 0x12000, scoped, tag = 'internal scratch']
  %s0 = inlined_call_operand.vmem [shape: f32[8,16], index: 0, kind: input, shape index: {}]
  %s1 = inlined_call_operand.vmem [shape: f32[16,32], index: 1, kind: input, shape index: {}]
  %s2 = inlined_call_operand.vmem [shape: f32[1,32], index: 2, kind: input, shape index: {}]
  %s3 = inlined_call_operand.vmem [shape: f32[32,4], index: 3, kind: input, shape index: {}]
  %s4 = inlined_call_operand.vmem [shape: f32[1,4], index: 4, kind: input, shape index: {}]
  %s5 = inlined_call_operand.vmem [shape: f32[8,4], index: 5, kind: output, shape index: {}]
  %s6 = sld [smem:[#allocation0]]
  $region30: #{linear_qnet_forward.1} parent=0
    _
  %s8 = ssub.s32 1, %s6
  %s9 = scalar_select 0, %s8, %s6
  // Predicated region
  $region2: #{linear_qnet_forward.1} parent=0 // pred_check
    _
  $region3: #{linear_qnet_forward.1} parent=0 // pred_check_branch
    %11 = sbr.rel (0) target = $region5
  $region4: #{linear_qnet_forward.1} parent=0 // pred_region
    _
  $region5: #{linear_qnet_forward.1} parent=0 // pred_fallthru
    _
  // Predicated region
  $region6: #{linear_qnet_forward.1} parent=0 // pred_check
    _
  $region7: #{linear_qnet_forward.1} parent=0 // pred_check_branch
    %13 = sbr.rel (0) target = $region9
  $region8: #{linear_qnet_forward.1} parent=0 // pred_region
    _
  $region9: #{linear_qnet_forward.1} parent=0 // pred_fallthru
    _
  // Predicated region
  $region10: #{linear_qnet_forward.1} parent=0 // pred_check
    _
  $region11: #{linear_qnet_forward.1} parent=0 // pred_check_branch
    %15 = sbr.rel (0) target = $region13
  $region12: #{linear_qnet_forward.1} parent=0 // pred_region
    _
  $region13: #{linear_qnet_forward.1} parent=0 // pred_fallthru
    _
  // Predicated region
  $region14: #{linear_qnet_forward.1} parent=0 // pred_check
    _
  $region15: #{linear_qnet_forward.1} parent=0 // pred_check_branch
    %17 = sbr.rel (0) target = $region17
  $region16: #{linear_qnet_forward.1} parent=0 // pred_region
    _
  $region17: #{linear_qnet_forward.1} parent=0 // pred_fallthru
    _
  // Predicated region
  $region18: #{linear_qnet_forward.1} parent=0 // pred_check
    _
  $region19: #{linear_qnet_forward.1} parent=0 // pred_check_branch
    %19 = sbr.rel (0) target = $region21
  $region20: #{linear_qnet_forward.1} parent=0 // pred_region
    _
  $region21: #{linear_qnet_forward.1} parent=0 // pred_fallthru
    _
  %v20 = vld [vmem:[%s0] sm:$0xff]
  %v21 = vld [vmem:[%s1] sm:$0xff]
  %v22 = vld [vmem:[%s1 + $0x8] sm:$0xff]
  %v23 = vld [vmem:[%s2] sm:$0x1]
  %v25 = vlaneseq
  %v26 = vshrl.u32 %v25, 7
  %v27 = vsub.s32 0, %v26
  %v28 = vrot.slane %v23, %v27
  %vm30 = vcmask 130048
  %v32 = vsel %vm30, %v20, 0
  %34 = vmatprep.subr.mxu0 0.0
  %35 = vmatpush1.msra.mxu0 0.0
  %36 = vmatprep.subr.mxu0 0.0
  %37 = vmatpush1.msra.mxu0 0.0
  %38 = vmatprep.subr.mxu0 0.0
  %39 = vmatpush1.msra.mxu0 0.0
  %40 = vmatprep.subr.mxu0 0.0
  %41 = vmatpush1.msra.mxu0 0.0
  %42 = vmatprep.subr.mxu0 0.0
  %43 = vmatpush1.msra.mxu0 0.0
  %44 = vmatprep.subr.mxu0 0.0
  %45 = vmatpush1.msra.mxu0 0.0
  %46 = vmatprep.subr.mxu0 0.0
  %47 = vmatpush1.msra.mxu0 0.0
  %48 = vmatprep.subr.mxu0 0.0
  %49 = vmatpush1.msra.mxu0 0.0
  %50 = vmatprep.subr.mxu0 0.0
  %51 = vmatpush1.msra.mxu0 0.0
  %52 = vmatprep.subr.mxu0 0.0
  %53 = vmatpush1.msra.mxu0 0.0
  %54 = vmatprep.subr.mxu0 0.0
  %55 = vmatpush1.msra.mxu0 0.0
  %56 = vmatprep.subr.mxu0 0.0
  %57 = vmatpush1.msra.mxu0 0.0
  %58 = vmatprep.subr.mxu0 0.0
  %59 = vmatpush1.msra.mxu0 0.0
  %60 = vmatprep.subr.mxu0 0.0
  %61 = vmatpush1.msra.mxu0 0.0
  %62 = vmatprep.subr.mxu0 0.0
  %63 = vmatpush1.msra.mxu0 %v22
  %64 = vmatprep.subr.mxu0 0.0
  %65 = vmatpush1.msra.mxu0 %v21
  %66 = vmatprep.subr.mxu0 0.0
  %67 = vmatpush2.msra.mxu0 0.0
  %68 = vmatprep.subr.mxu0 0.0
  %69 = vmatpush2.msra.mxu0 0.0
  %70 = vmatprep.subr.mxu0 0.0
  %71 = vmatpush2.msra.mxu0 0.0
  %72 = vmatprep.subr.mxu0 0.0
  %73 = vmatpush2.msra.mxu0 0.0
  %74 = vmatprep.subr.mxu0 0.0
  %75 = vmatpush2.msra.mxu0 0.0
  %76 = vmatprep.subr.mxu0 0.0
  %77 = vmatpush2.msra.mxu0 0.0
  %78 = vmatprep.subr.mxu0 0.0
  %79 = vmatpush2.msra.mxu0 0.0
  %80 = vmatprep.subr.mxu0 0.0
  %81 = vmatpush2.msra.mxu0 0.0
  %82 = vmatprep.subr.mxu0 0.0
  %83 = vmatpush2.msra.mxu0 0.0
  %84 = vmatprep.subr.mxu0 0.0
  %85 = vmatpush2.msra.mxu0 0.0
  %86 = vmatprep.subr.mxu0 0.0
  %87 = vmatpush2.msra.mxu0 0.0
  %88 = vmatprep.subr.mxu0 0.0
  %89 = vmatpush2.msra.mxu0 0.0
  %90 = vmatprep.subr.mxu0 0.0
  %91 = vmatpush2.msra.mxu0 0.0
  %92 = vmatprep.subr.mxu0 0.0
  %93 = vmatpush2.msra.mxu0 0.0
  %94 = vmatprep.subr.mxu0 0.0
  %95 = vmatpush2.msra.mxu0 0.0
  %96 = vmatprep.subr.mxu0 0.0
  %97 = vmatpush2.msra.mxu0 0.0
  %98 = vmatprep.mubr.f32.mxu0 0.0
  %99 = vmatmul.mubr.f32.gmra.mxu0 %v32
  %v100 = vpop.f32.mrf.mxu0
  %v101 = vadd.f32 %v28, %v100
  %v102 = vpop.f32.mrf.mxu0
  %103 = vdwg.mxu0
  %v104 = vmax.f32 %v101, 0.0
  %v105 = vld [vmem:[%s3] sm:$0xff]
  %v106 = vld [vmem:[%s3 + $0x8] sm:$0xff]
  %v107 = vld [vmem:[%s3 + $0x10] sm:$0xff]
  %v108 = vld [vmem:[%s3 + $0x18] sm:$0xff]
  %v109 = vld [vmem:[%s4] sm:$0x1]
  %v111 = vlaneseq
  %v112 = vshrl.u32 %v111, 7
  %v113 = vsub.s32 0, %v112
  %v114 = vrot.slane %v109, %v113
  %vm116 = vcmask 261120
  %v118 = vsel %vm116, %v104, 0
  %120 = vmatprep.subr.mxu0 0.0
  %121 = vmatpush1.msra.mxu0 0.0
  %122 = vmatprep.subr.mxu0 0.0
  %123 = vmatpush1.msra.mxu0 0.0
  %124 = vmatprep.subr.mxu0 0.0
  %125 = vmatpush1.msra.mxu0 0.0
  %126 = vmatprep.subr.mxu0 0.0
  %127 = vmatpush1.msra.mxu0 0.0
  %128 = vmatprep.subr.mxu0 0.0
  %129 = vmatpush1.msra.mxu0 0.0
  %130 = vmatprep.subr.mxu0 0.0
  %131 = vmatpush1.msra.mxu0 0.0
  %132 = vmatprep.subr.mxu0 0.0
  %133 = vmatpush1.msra.mxu0 0.0
  %134 = vmatprep.subr.mxu0 0.0
  %135 = vmatpush1.msra.mxu0 0.0
  %136 = vmatprep.subr.mxu0 0.0
  %137 = vmatpush1.msra.mxu0 0.0
  %138 = vmatprep.subr.mxu0 0.0
  %139 = vmatpush1.msra.mxu0 0.0
  %140 = vmatprep.subr.mxu0 0.0
  %141 = vmatpush1.msra.mxu0 0.0
  %142 = vmatprep.subr.mxu0 0.0
  %143 = vmatpush1.msra.mxu0 0.0
  %144 = vmatprep.subr.mxu0 0.0
  %145 = vmatpush1.msra.mxu0 %v108
  %146 = vmatprep.subr.mxu0 0.0
  %147 = vmatpush1.msra.mxu0 %v107
  %148 = vmatprep.subr.mxu0 0.0
  %149 = vmatpush1.msra.mxu0 %v106
  %150 = vmatprep.subr.mxu0 0.0
  %151 = vmatpush1.msra.mxu0 %v105
  %152 = vmatprep.subr.mxu0 0.0
  %153 = vmatpush2.msra.mxu0 0.0
  %154 = vmatprep.subr.mxu0 0.0
  %155 = vmatpush2.msra.mxu0 0.0
  %156 = vmatprep.subr.mxu0 0.0
  %157 = vmatpush2.msra.mxu0 0.0
  %158 = vmatprep.subr.mxu0 0.0
  %159 = vmatpush2.msra.mxu0 0.0
  %160 = vmatprep.subr.mxu0 0.0
  %161 = vmatpush2.msra.mxu0 0.0
  %162 = vmatprep.subr.mxu0 0.0
  %163 = vmatpush2.msra.mxu0 0.0
  %164 = vmatprep.subr.mxu0 0.0
  %165 = vmatpush2.msra.mxu0 0.0
  %166 = vmatprep.subr.mxu0 0.0
  %167 = vmatpush2.msra.mxu0 0.0
  %168 = vmatprep.subr.mxu0 0.0
  %169 = vmatpush2.msra.mxu0 0.0
  %170 = vmatprep.subr.mxu0 0.0
  %171 = vmatpush2.msra.mxu0 0.0
  %172 = vmatprep.subr.mxu0 0.0
  %173 = vmatpush2.msra.mxu0 0.0
  %174 = vmatprep.subr.mxu0 0.0
  %175 = vmatpush2.msra.mxu0 0.0
  %176 = vmatprep.subr.mxu0 0.0
  %177 = vmatpush2.msra.mxu0 0.0
  %178 = vmatprep.subr.mxu0 0.0
  %179 = vmatpush2.msra.mxu0 0.0
  %180 = vmatprep.subr.mxu0 0.0
  %181 = vmatpush2.msra.mxu0 0.0
  %182 = vmatprep.subr.mxu0 0.0
  %183 = vmatpush2.msra.mxu0 0.0
  %184 = vmatprep.mubr.f32.mxu0 0.0
  %185 = vmatmul.mubr.f32.gmra.mxu0 %v118
  %v186 = vpop.f32.mrf.mxu0
  %v187 = vadd.f32 %v114, %v186
  %v188 = vpop.f32.mrf.mxu0
  %189 = vdwg.mxu0
  %vm190 = vcmask 31744
  %191 = vst.msk [vmem:[%s5] sm:$0xff] %vm190, %v187
  // Predicated region
  $region22: #{linear_qnet_forward.1} parent=0 // pred_check
    _
  $region23: #{linear_qnet_forward.1} parent=0 // pred_check_branch
    %193 = sbr.rel (0) target = $region25
  $region24: #{linear_qnet_forward.1} parent=0 // pred_region
    _
  $region25: #{linear_qnet_forward.1} parent=0 // pred_fallthru
    _
  // Predicated region
  $region26: #{linear_qnet_forward.1} parent=0 // pred_check
    _
  $region27: #{linear_qnet_forward.1} parent=0 // pred_check_branch
    %195 = sbr.rel (0) target = $region29
  $region28: #{linear_qnet_forward.1} parent=0 // pred_region
    _
  $region29: #{linear_qnet_forward.1} parent=0 // pred_fallthru
    _

</llo_original>
